<compile_context>
chip_gen: v6e
topology: v6e:2x2x1
jax: 0.10.0
libtpu: 0.0.40
codegen_flags: <defaults>
</compile_context>

<pallas_src>
import functools
from typing import List, Tuple

import jax
import jax.numpy as jnp
from jax.experimental import pallas as pl
from jax.experimental.pallas import tpu as pltpu


# ----------------------------------------------------------------------------
# Vocab / parameter construction (mirrors TokenEmbedder.__init__, pure Python)
# ----------------------------------------------------------------------------
PAD_WORD, UNK_WORD, BOS_WORD, EOS_WORD, MSK_WORD = (
    "<PAD>", "<UNK>", "<BOS>", "<EOS>", "<MSK>")


def build_vocab_maps(vocab: List[Tuple[str, int]], vocab_size: int):
    index2word = [PAD_WORD, UNK_WORD, BOS_WORD, EOS_WORD, MSK_WORD]
    token_set = set(index2word)
    for word, _freq in vocab[:vocab_size]:
        if word not in token_set:
            index2word.append(word)
            token_set.add(word)
    word2index = {w: i for i, w in enumerate(index2word)}
    return index2word, word2index


def init_embedding_table(key, num_embeddings: int, embedding_dim: int,
                         padding_idx: int) -> jax.Array:
    # nn.Embedding default init: N(0, 1); padding_idx row zeroed.
    w = jax.random.normal(key, (num_embeddings, embedding_dim), dtype=jnp.float32)
    w = w.at[padding_idx].set(0.0)
    return w


# ----------------------------------------------------------------------------
# Kernels
# ----------------------------------------------------------------------------
def _embed_gather_kernel(ids_ref, emb_ref, out_ref, *, pack: int):
    # ids_ref : (1, tm) int32 block of flattened token ids
    # emb_ref : (V, D)  full embedding table, resident in VMEM
    # out_ref : (tm // pack, pack * D) lane-dense output block
    ids = ids_ref[0, :]                                   # (tm,)
    table = emb_ref[...]                                  # (V, D)
    # Direct gather: purely memory bound, exact f32 rows, no MXU / one-hot.
    # mode="clip" clamps out-of-range ids deterministically (torch would raise).
    rows = jnp.take(table, ids, axis=0, mode="clip")      # (tm, D)
    tm, d = rows.shape
    out_ref[...] = rows.reshape(tm // pack, pack * d).astype(out_ref.dtype)


def _embed_onehot_kernel(ids_ref, emb_ref, out_ref):
    # Fallback (previously validated formulation): one-hot @ table on the MXU.
    ids = ids_ref[0, :]                                   # (tm,)
    v = emb_ref.shape[0]
    col = jax.lax.broadcasted_iota(jnp.int32, (ids.shape[0], v), 1)
    onehot = (ids[:, None] == col).astype(emb_ref.dtype)  # (tm, V)
    out_ref[...] = jnp.dot(
        onehot, emb_ref[...], preferred_element_type=jnp.float32
    ).astype(out_ref.dtype)


# ----------------------------------------------------------------------------
# Layout / tiling choice
# ----------------------------------------------------------------------------
def _pick_layout(n: int, d: int, *, max_tm: int = 8192,
                 target_out_bytes: int = 1 << 20):
    """Return (pack, tm): lane-packing factor and token tile size."""
    # Lane-dense output: pack tokens along the 128-lane axis when D is a
    # small divisor of 128 (D=32 -> pack=4 -> 128 lanes per output row).
    if d < 128 and 128 % d == 0:
        pack = 128 // d
    else:
        pack = 1  # TODO(synk): pad D up to a multiple of 128 for awkward dims
    align = 8 * pack  # packed output blocks stay (8, 128)-aligned

    # ~1 MiB of f32 output per grid step (per-step overhead ~0.35 us), capped.
    tm = min(max_tm, max(align, target_out_bytes // (4 * d)))
    tm -= tm % align
    tm = max(tm, align)

    # Keep >= 2 grid steps when there is enough work (v7x has 2 TensorCores;
    # the "parallel" grid axis is how work gets sharded across them).
    while tm > align and (n + tm - 1) // tm < 2:
        tm = max(align, (tm // 2) // align * align)
    return pack, tm


# ----------------------------------------------------------------------------
# pallas_call wrapper
# ----------------------------------------------------------------------------
def _embed_call(ids2d: jax.Array, emb_table: jax.Array, *, pack: int,
                use_gather: bool, single_buffer_table: bool) -> jax.Array:
    grid, tm = ids2d.shape
    n_pad = grid * tm
    v, d = emb_table.shape

    if use_gather:
        kernel = functools.partial(_embed_gather_kernel, pack=pack)
        out_rows, blk_rows, out_cols = n_pad // pack, tm // pack, pack * d
        flops = 0
    else:
        kernel = _embed_onehot_kernel
        out_rows, blk_rows, out_cols = n_pad, tm, d
        flops = 2 * n_pad * v * d

    if single_buffer_table:
        # Constant block index -> a second pipeline buffer is pure VMEM waste.
        table_spec = pl.BlockSpec((v, d), lambda i: (0, 0),
                                  pipeline_mode=pl.Buffered(1))
    else:
        table_spec = pl.BlockSpec((v, d), lambda i: (0, 0))

    return pl.pallas_call(
        kernel,
        out_shape=jax.ShapeDtypeStruct((out_rows, out_cols), jnp.float32),
        grid_spec=pltpu.PrefetchScalarGridSpec(
            num_scalar_prefetch=0,
            grid=(grid,),
            in_specs=[
                pl.BlockSpec((1, tm), lambda i: (i, 0)),   # token-id block
                table_spec,                                # full table (VMEM)
            ],
            out_specs=pl.BlockSpec((blk_rows, out_cols), lambda i: (i, 0)),
        ),
        compiler_params=pltpu.CompilerParams(
            dimension_semantics=("parallel",),
            vmem_limit_bytes=32 * 1024 * 1024,
        ),
        cost_estimate=pl.CostEstimate(
            flops=flops,
            transcendentals=0,
            bytes_accessed=n_pad * 4 + v * d * 4 + n_pad * d * 4,
        ),
    )(ids2d, emb_table)


# Capability probe: first variant that lowers on this JAX / TPU is cached.
_KERNEL_VARIANT = None
_VARIANTS = (
    dict(use_gather=True, lane_pack=True, single_buffer_table=True),    # best
    dict(use_gather=True, lane_pack=True, single_buffer_table=False),
    dict(use_gather=True, lane_pack=False, single_buffer_table=False),
    dict(use_gather=False, lane_pack=False, single_buffer_table=False),  # known-good
)


def token_embed_forward(ids: jax.Array, emb_table: jax.Array, pad_ix: int,
                        *, max_tm: int = 8192) -> jax.Array:
    """Equivalent of TokenEmbedder.forward(inputs, noise=False).

    ids:       (B, S) int32 token indices
    emb_table: (V, D) float32 embedding weights
    returns:   (B, S, D) float32
    """
    # TODO(synk): noise=True (word_shuffle / word_dropout / word_masking) is
    # host-side numpy RNG over Python id lists; no Pallas equivalent.
    global _KERNEL_VARIANT
    b, s = ids.shape
    v, d = emb_table.shape
    n = b * s

    pack, tm = _pick_layout(n, d, max_tm=max_tm)
    n_pad = pl.cdiv(n, tm) * tm

    flat = ids.reshape(n).astype(jnp.int32)
    if n_pad != n:  # pad only the ragged tail with PAD rows (sliced off below)
        flat = jnp.pad(flat, (0, n_pad - n), constant_values=pad_ix)
    ids2d = flat.reshape(n_pad // tm, tm)

    def run(use_gather: bool, lane_pack: bool, single_buffer_table: bool):
        return _embed_call(
            ids2d, emb_table,
            pack=pack if (use_gather and lane_pack) else 1,
            use_gather=use_gather,
            single_buffer_table=single_buffer_table)

    if _KERNEL_VARIANT is None:
        err = None
        for variant in _VARIANTS:
            try:
                out = jax.block_until_ready(run(**variant))
                _KERNEL_VARIANT = variant
                break
            except Exception as e:  # lowering not supported on this build
                err = e
        else:
            raise err
    else:
        out = run(**_KERNEL_VARIANT)

    # Unpack the lane-dense (n_pad/pack, pack*D) slab back to (B, S, D).
    return out.reshape(n_pad, d)[:n].reshape(b, s, d)


# ----------------------------------------------------------------------------
# Demo / self-check
# ----------------------------------------------------------------------------
if __name__ == "__main__":
    # Deterministic synthetic vocab: (word, freq) pairs.
    raw_vocab = [(f"word{i}", 100 - i) for i in range(20)] + [("42", 5)]
    vocab_size = 16
    embedding_dim = 32

    index2word, word2index = build_vocab_maps(raw_vocab, vocab_size)
    V = len(index2word)
    pad_ix = word2index[PAD_WORD]
    bos_ix = word2index[BOS_WORD]
    eos_ix = word2index[EOS_WORD]

    key = jax.random.PRNGKey(0)
    k_emb, k_ids, k_ids2 = jax.random.split(key, 3)
    emb_table = init_embedding_table(k_emb, V, embedding_dim, pad_ix)

    # Check 1: small (B, S) like the module's forward (BOS ... EOS).
    B, S = 2, 8
    body = jax.random.randint(k_ids, (B, S), 0, V, dtype=jnp.int32)
    ids = body.at[:, 0].set(bos_ix).at[:, S - 1].set(eos_ix)
    out = jax.block_until_ready(token_embed_forward(ids, emb_table, pad_ix))
    ref = jnp.take(emb_table, ids, axis=0)   # == torch.nn.Embedding lookup
    assert out.shape == (B, S, embedding_dim)
    assert jnp.allclose(out, ref, atol=1e-5), "mismatch vs gather reference (1)"

    # Check 2: larger batch to exercise lane-packing + a multi-step grid.
    B2, S2 = 4, 64
    ids2 = jax.random.randint(k_ids2, (B2, S2), 0, V, dtype=jnp.int32)
    out2 = jax.block_until_ready(token_embed_forward(ids2, emb_table, pad_ix))
    ref2 = jnp.take(emb_table, ids2, axis=0)
    assert out2.shape == (B2, S2, embedding_dim)
    assert jnp.allclose(out2, ref2, atol=1e-5), "mismatch vs gather reference (2)"

    print("KERNEL_OK")
</pallas_src>

<mosaic_0001>
module attributes {stable_mosaic.version = 11 : i64} {
  func.func @_embed_onehot_kernel(%arg0: i32, %arg1: memref<1x32xi32, #tpu.memory_space<vmem>>, %arg2: memref<21x32xf32, #tpu.memory_space<vmem>>, %arg3: memref<32x32xf32, #tpu.memory_space<vmem>>) attributes {dimension_semantics = [#tpu.dimension_semantics<parallel>], iteration_bounds = array<i64: 1>, scalar_prefetch = 0 : i64, scratch_operands = 0 : i64, tpu.core_type = #tpu.core_type<tc>, window_params = [{transform_indices = @transform_0, window_bounds = array<i64: 1, 32>}, {pipeline_mode = #tpu.pipeline_mode<synchronous>, transform_indices = @transform_1, window_bounds = array<i64: 21, 32>}, {transform_indices = @transform_2, window_bounds = array<i64: 32, 32>}]} {
    %c0 = arith.constant 0 : index
    %c0_0 = arith.constant 0 : index
    %0 = vector.load %arg1[%c0, %c0_0] : memref<1x32xi32, #tpu.memory_space<vmem>>, vector<1x32xi32>
    %1 = vector.shape_cast %0 : vector<1x32xi32> to vector<32xi32>
    %2 = tpu.iota {dimensions = array<i32: 1>} : vector<32x21xi32>
    %3 = vector.shape_cast %1 : vector<32xi32> to vector<32x1xi32>
    %4 = vector.broadcast %3 : vector<32x1xi32> to vector<32x21xi32>
    %5 = arith.cmpi eq, %4, %2 : vector<32x21xi32>
    %6 = arith.extui %5 : vector<32x21xi1> to vector<32x21xi32>
    %7 = arith.sitofp %6 : vector<32x21xi32> to vector<32x21xf32>
    %c0_1 = arith.constant 0 : index
    %c0_2 = arith.constant 0 : index
    %8 = vector.load %arg2[%c0_1, %c0_2] : memref<21x32xf32, #tpu.memory_space<vmem>>, vector<21x32xf32>
    %cst = arith.constant dense<0.000000e+00> : vector<32x32xf32>
    %9 = tpu.matmul %7, %8, %cst {dimension_numbers = #tpu.dot_dimension_numbers<[1], [0], [0], [1], [0, 0, 1, 1], [], []>} : vector<32x21xf32>, vector<21x32xf32>, vector<32x32xf32> -> vector<32x32xf32>
    %c0_3 = arith.constant 0 : index
    %c0_4 = arith.constant 0 : index
    %10 = vector.load %arg3[%c0_3, %c0_4] : memref<32x32xf32, #tpu.memory_space<vmem>>, vector<32x32xf32>
    tpu.vector_store %arg3[%c0_3, %c0_4], %9 {strides = array<i32>} : memref<32x32xf32, #tpu.memory_space<vmem>>, vector<32x32xf32>,
    return
  }
  func.func @transform_0(%arg0: i32) -> (i32, i32) {
    %c0_i32 = arith.constant 0 : i32
    %c0_i32_0 = arith.constant 0 : i32
    return %arg0, %c0_i32 : i32, i32
  }
  func.func @transform_1(%arg0: i32) -> (i32, i32) {
    %c0_i32 = arith.constant 0 : i32
    %c0_i32_0 = arith.constant 0 : i32
    %c0_i32_1 = arith.constant 0 : i32
    return %c0_i32, %c0_i32_0 : i32, i32
  }
  func.func @transform_2(%arg0: i32) -> (i32, i32) {
    %c0_i32 = arith.constant 0 : i32
    %c0_i32_0 = arith.constant 0 : i32
    return %arg0, %c0_i32 : i32, i32
  }
}

</mosaic_0001>

<llo_original>
// kernel: tpu_custom_call.1
$region0: #{tpu_custom_call.1}
  #allocation0 [shape = 'u32[]', space=smem, size = 0x4, offset = 0x4, fixed_abs, tag = 'smem constant byte address 0x4 - core index']
  #allocation1 [shape = 'u32[144,128]{1,0:T(1,128)}', space=vmem, size = 0x12000, scoped, tag = 'internal scratch']
  %s0 = inlined_call_operand.hbm [shape: s32[1,32], index: 0, kind: input, shape index: {}]
  %s1 = inlined_call_operand.hbm [shape: f32[21,32], index: 1, kind: input, shape index: {}]
  %s2 = inlined_call_operand.hbm [shape: f32[32,32], index: 2, kind: output, shape index: {}]
  %s3 = sld [smem:[#allocation0]]
  $region26: #{tpu_custom_call.1} parent=0
    _
  %s5 = ssub.s32 1, %s3
  %s6 = scalar_select 0, %s5, %s3
  $region1: #{tpu_custom_call.1} parent=0
    #allocation2 [shape = 'u8[512]{0}', space=vmem, size = 0x400, scoped, tag = 'input window, operand 0, single buffered']
    #allocation3 [shape = 's32[1]{0}', space=sflag, size = 0x4, scoped, tag = 'scoped memory for tpu_custom_call.1']
    #allocation4 [shape = 's32[1]{0}', space=sflag, size = 0x4, scoped, tag = 'scoped memory for tpu_custom_call.1']
    #allocation5 [shape = 'u8[12288]{0}', space=vmem, size = 0x3000, scoped, tag = 'input window, operand 1, single buffered']
    #allocation6 [shape = 's32[1]{0}', space=sflag, size = 0x4, scoped, tag = 'scoped memory for tpu_custom_call.1']
    #allocation7 [shape = 'u8[16384]{0}', space=vmem, size = 0x4000, scoped, tag = 'output window, operand 0, single buffered']
    %7 = vsyncpa [#allocation3], 0
    %8 = vsyncpa [#allocation6], 0
    %9 = vsyncpa [#allocation4], 0
    // Predicated region
    $region2: #{tpu_custom_call.1} parent=1 // pred_check
      _
    $region3: #{tpu_custom_call.1} parent=1 // pred_check_branch
      %11 = sbr.rel (0) target = $region5
    $region4: #{tpu_custom_call.1} parent=1 // pred_region
      %s13 = ssub.s32 16, 16
      %14 = vsyncadd [#allocation3], %s13
      %s16 = sshll.u32 [#allocation2], 4
      %s17 = int_to_ptr.vmem [resolvable:$true] %s16
      %19 = dma.hbm_to_vmem [thread:$0]  %s0, 16, %s17, [#allocation3]
    $region5: #{tpu_custom_call.1} parent=1 // pred_fallthru
      _
    // Predicated region
    $region6: #{tpu_custom_call.1} parent=1 // pred_check
      _
    $region7: #{tpu_custom_call.1} parent=1 // pred_check_branch
      %21 = sbr.rel (0) target = $region9
    $region8: #{tpu_custom_call.1} parent=1 // pred_region
      %s23 = ssub.s32 384, 384
      %24 = vsyncadd [#allocation6], %s23
      %s25 = sshll.u32 [#allocation5], 4
      %s26 = int_to_ptr.vmem [resolvable:$true] %s25
      %31 = dma.hbm_to_vmem [thread:$0]  %s1, 384, %s26, [#allocation6], 128, 128, 8
    $region9: #{tpu_custom_call.1} parent=1 // pred_fallthru
      _
    // Predicated region
    $region10: #{tpu_custom_call.1} parent=1 // pred_check
      _
    $region11: #{tpu_custom_call.1} parent=1 // pred_check_branch
      %33 = sbr.rel (0) target = $region13
    $region12: #{tpu_custom_call.1} parent=1 // pred_region
      %34 = dma.done [#allocation3], 16
    $region13: #{tpu_custom_call.1} parent=1 // pred_fallthru
      _
    // Predicated region
    $region14: #{tpu_custom_call.1} parent=1 // pred_check
      _
    $region15: #{tpu_custom_call.1} parent=1 // pred_check_branch
      %36 = sbr.rel (0) target = $region17
    $region16: #{tpu_custom_call.1} parent=1 // pred_region
      %37 = dma.done [#allocation6], 384
    $region17: #{tpu_custom_call.1} parent=1 // pred_fallthru
      _
    %v38 = vld [vmem:[#allocation2] sm:$0x1]
    %v39 = vlaneseq
    %v40 = vand.u32 %v39, 127
    %v41 = vlaneseq
    %v42 = vshrl.u32 %v41, 7
    %v43 = vsub.s32 0, %v42
    %v44 = vrot.slane %v38, %v43
    %46 = vbcast.lane.b32.xlu0 %v44, 256
    %v47 = vpop.permute.xlu0 %46
    %s49 = sor.u32 256, 8
    %50 = vbcast.lane.b32.xlu0 %v44, %s49
    %v51 = vpop.permute.xlu0 %50
    %s53 = sor.u32 256, 16
    %54 = vbcast.lane.b32.xlu0 %v44, %s53
    %v55 = vpop.permute.xlu0 %54
    %s57 = sor.u32 256, 24
    %58 = vbcast.lane.b32.xlu0 %v44, %s57
    %v59 = vpop.permute.xlu0 %58
    %vm60 = vcmp.eq.s32.totalorder %v47, %v40
    %vm61 = vcmp.eq.s32.totalorder %v51, %v40
    %vm62 = vcmp.eq.s32.totalorder %v55, %v40
    %vm63 = vcmp.eq.s32.totalorder %v59, %v40
    %v64 = vsel %vm60, 1, 0
    %v65 = vsel %vm61, 1, 0
    %v66 = vsel %vm62, 1, 0
    %v67 = vsel %vm63, 1, 0
    %v68 = vcvt.s32.f32 %v64
    %v69 = vcvt.s32.f32 %v65
    %v70 = vcvt.s32.f32 %v66
    %v71 = vcvt.s32.f32 %v67
    %v72 = vld [vmem:[#allocation5] sm:$0xff]
    %v73 = vld [vmem:[#allocation5 + $0x8] sm:$0xff]
    %v74 = vld [vmem:[#allocation5 + $0x10] sm:$0x1f]
    %vm75 = vcmask 171008
    %v77 = vsel %vm75, %v68, 0
    %v80 = vsel %vm75, %v69, 0
    %v83 = vsel %vm75, %v70, 0
    %v86 = vsel %vm75, %v71, 0
    %vm88 = vcmask 1044480
    %v90 = vsel %vm88, %v74, 0
    %92 = vmatprep.subr.mxu0 0.0
    %93 = vmatpush1.msra.mxu0 0.0
    %94 = vmatprep.subr.mxu0 0.0
    %95 = vmatpush1.msra.mxu0 0.0
    %96 = vmatprep.subr.mxu0 0.0
    %97 = vmatpush1.msra.mxu0 0.0
    %98 = vmatprep.subr.mxu0 0.0
    %99 = vmatpush1.msra.mxu0 0.0
    %100 = vmatprep.subr.mxu0 0.0
    %101 = vmatpush1.msra.mxu0 0.0
    %102 = vmatprep.subr.mxu0 0.0
    %103 = vmatpush1.msra.mxu0 0.0
    %104 = vmatprep.subr.mxu0 0.0
    %105 = vmatpush1.msra.mxu0 0.0
    %106 = vmatprep.subr.mxu0 0.0
    %107 = vmatpush1.msra.mxu0 0.0
    %108 = vmatprep.subr.mxu0 0.0
    %109 = vmatpush1.msra.mxu0 0.0
    %110 = vmatprep.subr.mxu0 0.0
    %111 = vmatpush1.msra.mxu0 0.0
    %112 = vmatprep.subr.mxu0 0.0
    %113 = vmatpush1.msra.mxu0 0.0
    %114 = vmatprep.subr.mxu0 0.0
    %115 = vmatpush1.msra.mxu0 0.0
    %116 = vmatprep.subr.mxu0 0.0
    %117 = vmatpush1.msra.mxu0 0.0
    %118 = vmatprep.subr.mxu0 0.0
    %119 = vmatpush1.msra.mxu0 %v90
    %120 = vmatprep.subr.mxu0 0.0
    %121 = vmatpush1.msra.mxu0 %v73
    %122 = vmatprep.subr.mxu0 0.0
    %123 = vmatpush1.msra.mxu0 %v72
    %124 = vmatprep.subr.mxu0 0.0
    %125 = vmatpush2.msra.mxu0 0.0
    %126 = vmatprep.subr.mxu0 0.0
    %127 = vmatpush2.msra.mxu0 0.0
    %128 = vmatprep.subr.mxu0 0.0
    %129 = vmatpush2.msra.mxu0 0.0
    %130 = vmatprep.subr.mxu0 0.0
    %131 = vmatpush2.msra.mxu0 0.0
    %132 = vmatprep.subr.mxu0 0.0
    %133 = vmatpush2.msra.mxu0 0.0
    %134 = vmatprep.subr.mxu0 0.0
    %135 = vmatpush2.msra.mxu0 0.0
    %136 = vmatprep.subr.mxu0 0.0
    %137 = vmatpush2.msra.mxu0 0.0
    %138 = vmatprep.subr.mxu0 0.0
    %139 = vmatpush2.msra.mxu0 0.0
    %140 = vmatprep.subr.mxu0 0.0
    %141 = vmatpush2.msra.mxu0 0.0
    %142 = vmatprep.subr.mxu0 0.0
    %143 = vmatpush2.msra.mxu0 0.0
    %144 = vmatprep.subr.mxu0 0.0
    %145 = vmatpush2.msra.mxu0 0.0
    %146 = vmatprep.subr.mxu0 0.0
    %147 = vmatpush2.msra.mxu0 0.0
    %148 = vmatprep.subr.mxu0 0.0
    %149 = vmatpush2.msra.mxu0 0.0
    %150 = vmatprep.subr.mxu0 0.0
    %151 = vmatpush2.msra.mxu0 0.0
    %152 = vmatprep.subr.mxu0 0.0
    %153 = vmatpush2.msra.mxu0 0.0
    %154 = vmatprep.subr.mxu0 0.0
    %155 = vmatpush2.msra.mxu0 0.0
    %156 = vmatprep.mubr.f32.mxu0 0.0
    %157 = vmatmul.mubr.f32.gmra.mxu0 %v77
    %v158 = vpop.f32.mrf.mxu0
    %v159 = vadd.f32 0.0, %v158
    %v160 = vpop.f32.mrf.mxu0
    %161 = vmatprep.mubr.f32.mxu0 0.0
    %162 = vmatmul.mubr.f32.gmra.mxu0 %v80
    %v163 = vpop.f32.mrf.mxu0
    %v164 = vadd.f32 0.0, %v163
    %v165 = vpop.f32.mrf.mxu0
    %166 = vmatprep.mubr.f32.mxu0 0.0
    %167 = vmatmul.mubr.f32.gmra.mxu0 %v83
    %v168 = vpop.f32.mrf.mxu0
    %v169 = vadd.f32 0.0, %v168
    %v170 = vpop.f32.mrf.mxu0
    %171 = vmatprep.mubr.f32.mxu0 0.0
    %172 = vmatmul.mubr.f32.gmra.mxu0 %v86
    %v173 = vpop.f32.mrf.mxu0
    %v174 = vadd.f32 0.0, %v173
    %v175 = vpop.f32.mrf.mxu0
    %176 = vdwg.mxu0
    %vm177 = vcmask 261120
    %178 = vst.msk [vmem:[#allocation7] sm:$0xff] %vm177, %v159
    %179 = vst.msk [vmem:[#allocation7 + $0x8] sm:$0xff] %vm177, %v164
    %180 = vst.msk [vmem:[#allocation7 + $0x10] sm:$0xff] %vm177, %v169
    %181 = vst.msk [vmem:[#allocation7 + $0x18] sm:$0xff] %vm177, %v174
    // Predicated region
    $region18: #{tpu_custom_call.1} parent=1 // pred_check
      _
    $region19: #{tpu_custom_call.1} parent=1 // pred_check_branch
      %183 = sbr.rel (0) target = $region21
    $region20: #{tpu_custom_call.1} parent=1 // pred_region
      %s185 = ssub.s32 512, 512
      %186 = vsyncadd [#allocation4], %s185
      %s187 = sshll.u32 [#allocation7], 4
      %s188 = int_to_ptr.vmem [resolvable:$true] %s187
      %193 = dma.vmem_to_hbm [thread:$0]  %s188, 512, %s2, [#allocation4], 128, 128, 8
    $region21: #{tpu_custom_call.1} parent=1 // pred_fallthru
      _
    // Predicated region
    $region22: #{tpu_custom_call.1} parent=1 // pred_check
      _
    $region23: #{tpu_custom_call.1} parent=1 // pred_check_branch
      %195 = sbr.rel (0) target = $region25
    $region24: #{tpu_custom_call.1} parent=1 // pred_region
      %196 = dma.done [#allocation4], 512
    $region25: #{tpu_custom_call.1} parent=1 // pred_fallthru
      _
    %197 = vsyncpa [#allocation3], 1
    %198 = vsyncpa [#allocation6], 1
    %199 = vsyncpa [#allocation4], 1

</llo_original>
